<compile_context>
chip_gen: v5e
topology: v5e:2x2
jax: 0.10.0
libtpu: 0.0.40
codegen_flags: <defaults>
</compile_context>

<pallas_src>
import math

import jax
import jax.numpy as jnp
from jax.experimental import pallas as pl
from jax.experimental.pallas import tpu as pltpu


# Scoped-VMEM budget requested from Mosaic: above v5e's 16 MiB default, within
# v7x's 64 MiB physical VMEM.  Tiles are sized so (x in + out) * double
# buffering stays well below this.
_VMEM_LIMIT_BYTES = 32 * 1024 * 1024


def _apply_kernel(mask_ref, x_ref, o_ref):
    # Broadcasted multiply: mask block has extent 1 on the row axis and
    # broadcasts across the x tile's rows.  Pure VPU work (1 of 4 VALU slots);
    # the kernel is HBM-bandwidth bound.
    # TODO(synk): if a v7x bundle dump ever shows the broadcast filling VALU,
    # pre-broadcast the mask to (*, pack, D) so the body is a plain vreg mul.
    o_ref[...] = x_ref[...] * mask_ref[...]


def _sublane_pack(dtype):
    # Rows per packed sublane tile: f32 -> 8, bf16 -> 16, int8/fp8 -> 32.
    return max(8, 32 // jnp.dtype(dtype).itemsize)


def _tile_target_bytes():
    """Per-generation x/out tile size target."""
    default = 4 * 1024 * 1024
    try:
        vmem = int(pltpu.get_tpu_info().vmem_capacity_bytes)
    except Exception:  # off-TPU / interpret / field rename: safe default.
        return default
    # Larger tiles amortize the ~0.35 us per-grid-step overhead, which matters
    # most on v7x's 3.2 TB/s HBM; 2 arrays x 2 buffers x tile must stay inside
    # the 32 MiB scoped budget.
    #   v7x   (64 MiB VMEM)  -> 4 MiB tiles
    #   v5e/v6e (128 MiB)    -> 6 MiB tiles
    return int(min(6 * 1024 * 1024, max(2 * 1024 * 1024, vmem // 16)))


def _apply_batched_rows(x, mask, tile_target, donate_x):
    """Small rows (L*D tiny): tile over the batch axis with (TB, L, D) slabs."""
    B, L, D = x.shape
    itemsize = jnp.dtype(x.dtype).itemsize
    row_bytes = max(1, L * D * itemsize)
    tb = max(1, min(B, tile_target // row_bytes))
    if B >= 2:
        # v7x has two TensorCores: keep at least two parallel grid steps.
        tb = min(tb, -(-B // 2))
    grid = (pl.cdiv(B, tb),)
    return pl.pallas_call(
        _apply_kernel,
        out_shape=jax.ShapeDtypeStruct((B, L, D), x.dtype),
        grid=grid,
        in_specs=[
            pl.BlockSpec((tb, 1, D), lambda b: (b, 0, 0)),   # mask slab
            pl.BlockSpec((tb, L, D), lambda b: (b, 0, 0)),   # x slab
        ],
        out_specs=pl.BlockSpec((tb, L, D), lambda b: (b, 0, 0)),
        compiler_params=pltpu.CompilerParams(
            dimension_semantics=("parallel",),
            vmem_limit_bytes=_VMEM_LIMIT_BYTES,
        ),
        input_output_aliases=({1: 0} if donate_x else {}),
    )(mask, x)


def _apply_length_tiled(x, mask, tile_target, donate_x):
    """Tile along the row axis; the (1, 1, W) mask block stays resident per b."""
    B, R, W = x.shape                      # rows R, row width W (lane axis)
    itemsize = jnp.dtype(x.dtype).itemsize
    pack = _sublane_pack(x.dtype)
    tl = tile_target // max(1, W * itemsize)
    if tl >= R:
        tl = R
    else:
        tl = max(pack, (tl // pack) * pack)
    if B == 1 and tl == R and R >= 2 * pack:
        # v7x dual TensorCore: ensure at least two parallel tiles when B == 1.
        half = -(-R // 2)                  # ceil(R / 2)
        tl = -(-half // pack) * pack       # round up to the sublane pack
    grid = (B, pl.cdiv(R, tl))
    return pl.pallas_call(
        _apply_kernel,
        out_shape=jax.ShapeDtypeStruct((B, R, W), x.dtype),
        grid=grid,
        in_specs=[
            # Mask block index is constant along the inner L axis -> resident.
            pl.BlockSpec((1, 1, W), lambda b, l: (b, 0, 0)),
            pl.BlockSpec((1, tl, W), lambda b, l: (b, l, 0)),
        ],
        out_specs=pl.BlockSpec((1, tl, W), lambda b, l: (b, l, 0)),
        compiler_params=pltpu.CompilerParams(
            dimension_semantics=("parallel", "parallel"),
            vmem_limit_bytes=_VMEM_LIMIT_BYTES,
        ),
        input_output_aliases=({1: 0} if donate_x else {}),
    )(mask, x)


def variational_dropout_apply(x, mask, *, tile_target_bytes=None, donate_x=False):
    """out = mask * x with mask of shape (B, 1, D) broadcast over L."""
    B, L, D = x.shape
    assert mask.shape == (B, 1, D), "mask must be (B, 1, D)"
    mask = mask.astype(x.dtype)
    itemsize = jnp.dtype(x.dtype).itemsize
    tile_target = (_tile_target_bytes() if tile_target_bytes is None
                   else int(tile_target_bytes))
    row_bytes = L * D * itemsize

    # 1) Small rows: one (TB, L, D) slab per grid step (MiB-scale DMAs instead
    #    of a ~0.35 us grid step per tiny row).  Block last-two dims equal the
    #    full array dims, so any L / D is legal here.
    if B > 1 and 2 * row_bytes <= tile_target:
        return _apply_batched_rows(x, mask, tile_target, donate_x)

    # 2) Big rows: tile along L.  If D is not a multiple of 128 lanes, fold
    #    k = 128/gcd(D, 128) consecutive L rows so the last dim becomes
    #    rep = k*D (a multiple of 128) -> dense vregs + unmasked full-width
    #    stores.  The mask is tiled only to that small repeat (VMEM resident).
    k = 128 // math.gcd(D, 128)
    if k > 1 and L % k == 0:
        x2 = x.reshape(B, L // k, k * D)      # contiguous row-major fold
        mask2 = jnp.tile(mask, (1, 1, k))     # (B, 1, k*D), a few KiB per row
        out = _apply_length_tiled(x2, mask2, tile_target, donate_x)
        return out.reshape(B, L, D)

    # k == 1 (D already lane dense) or L % k != 0 (fold impossible).
    # TODO(synk): the L % k != 0 fallback keeps D (not a multiple of 128) as the
    # lane axis -> correct but uses masked partial stores.
    return _apply_length_tiled(x, mask, tile_target, donate_x)


# ---------------------------------------------------------------------------
# Mask generation (one-time, off the hot path): bernoulli(1-p)/(1-p).
# ---------------------------------------------------------------------------
def make_variational_mask(batch, hidden, dtype, drop_prob, key):
    keep_prob = 1.0 - drop_prob
    keep = jax.random.bernoulli(key, p=keep_prob, shape=(batch, 1, hidden))
    mask_f32 = keep.astype(jnp.float32) / jnp.float32(keep_prob)
    return mask_f32.astype(dtype)


# ---------------------------------------------------------------------------
# Module-like wrapper mirroring the PyTorch class semantics.
# ---------------------------------------------------------------------------
class VariationalDropout:
    def __init__(self, drop_prob=0.0, length_first=False):
        self.drop_prob = drop_prob
        self.length_first = length_first
        self.mask = None
        self.training = True

    def update_mask(self, shape, dtype, key=None, set_to_none=False):
        if set_to_none:
            self.mask = None
            return None
        B, one, D = shape
        assert one == 1, "mask is shared across the length axis"
        if key is None:
            key = jax.random.PRNGKey(0)
        self.mask = make_variational_mask(B, D, dtype, self.drop_prob, key)
        return self.mask

    def __call__(self, x):
        if (not self.training) or self.drop_prob == 0:
            return x
        assert self.mask is not None, "Mask is not initialized"
        return variational_dropout_apply(x, self.mask)


if __name__ == "__main__":
    def _ref(x, mask):
        return x * jnp.broadcast_to(mask.astype(x.dtype), x.shape)

    key = jax.random.PRNGKey(0)
    kx, kmask, k1, k2, k3 = jax.random.split(key, 5)

    # Main module-style example (small shapes): batch=2, seq(L)=8, hidden=32.
    B, L, D = 2, 8, 32
    x = jax.random.normal(kx, (B, L, D), dtype=jnp.float32)
    vd = VariationalDropout(drop_prob=0.3)
    vd.update_mask((B, 1, D), jnp.float32, key=kmask)
    out = jax.block_until_ready(vd(x))
    assert out.shape == x.shape and out.dtype == x.dtype
    assert jnp.allclose(out, _ref(x, vd.mask), atol=1e-6), "batch path mismatch"

    # Coverage: lane-dense fold path (D % 128 != 0), forced tiny tile target so
    # several L-tiles and the B==1 branch are exercised.
    xb = jax.random.normal(k1, (1, 64, 32), dtype=jnp.float32)
    mb = make_variational_mask(1, 32, jnp.float32, 0.25, k2)
    outb = jax.block_until_ready(
        variational_dropout_apply(xb, mb, tile_target_bytes=4096))
    assert jnp.allclose(outb, _ref(xb, mb), atol=1e-6), "fold path mismatch"

    # Coverage: D % 128 == 0 length-tiled path with multiple tiles.
    xc = jax.random.normal(k3, (2, 32, 128), dtype=jnp.float32)
    mc = make_variational_mask(2, 128, jnp.float32, 0.1, k2)
    outc = jax.block_until_ready(
        variational_dropout_apply(xc, mc, tile_target_bytes=8192))
    assert jnp.allclose(outc, _ref(xc, mc), atol=1e-6), "lane-dense path mismatch"

    # Coverage: fold-impossible fallback (L % k != 0, D % 128 != 0).
    xd = jax.random.normal(k1, (1, 7, 48), dtype=jnp.float32)
    md = make_variational_mask(1, 48, jnp.float32, 0.5, k3)
    outd = jax.block_until_ready(variational_dropout_apply(xd, md))
    assert jnp.allclose(outd, _ref(xd, md), atol=1e-6), "fallback path mismatch"

    # eval mode / drop_prob == 0 returns x unchanged.
    vd.training = False
    assert jnp.array_equal(vd(x), x)

    print("KERNEL_OK")
</pallas_src>

<mosaic_0001>
module attributes {stable_mosaic.version = 11 : i64} {
  func.func @_apply_kernel(%arg0: i32, %arg1: memref<1x1x32xf32, #tpu.memory_space<vmem>>, %arg2: memref<1x8x32xf32, #tpu.memory_space<vmem>>, %arg3: memref<1x8x32xf32, #tpu.memory_space<vmem>>) attributes {dimension_semantics = [#tpu.dimension_semantics<parallel>], iteration_bounds = array<i64: 2>, scalar_prefetch = 0 : i64, scratch_operands = 0 : i64, tpu.core_type = #tpu.core_type<tc>, window_params = [{transform_indices = @transform_0, window_bounds = array<i64: 1, 1, 32>}, {transform_indices = @transform_1, window_bounds = array<i64: 1, 8, 32>}, {transform_indices = @transform_2, window_bounds = array<i64: 1, 8, 32>}]} {
    %c0 = arith.constant 0 : index
    %c0_0 = arith.constant 0 : index
    %c0_1 = arith.constant 0 : index
    %0 = vector.load %arg2[%c0, %c0_0, %c0_1] : memref<1x8x32xf32, #tpu.memory_space<vmem>>, vector<1x8x32xf32>
    %c0_2 = arith.constant 0 : index
    %c0_3 = arith.constant 0 : index
    %c0_4 = arith.constant 0 : index
    %1 = vector.load %arg1[%c0_2, %c0_3, %c0_4] : memref<1x1x32xf32, #tpu.memory_space<vmem>>, vector<1x1x32xf32>
    %2 = vector.broadcast %1 : vector<1x1x32xf32> to vector<1x8x32xf32>
    %3 = arith.mulf %0, %2 : vector<1x8x32xf32>
    %c0_5 = arith.constant 0 : index
    %c0_6 = arith.constant 0 : index
    %c0_7 = arith.constant 0 : index
    %4 = vector.load %arg3[%c0_5, %c0_6, %c0_7] : memref<1x8x32xf32, #tpu.memory_space<vmem>>, vector<1x8x32xf32>
    tpu.vector_store %arg3[%c0_5, %c0_6, %c0_7], %3 {strides = array<i32>} : memref<1x8x32xf32, #tpu.memory_space<vmem>>, vector<1x8x32xf32>,
    return
  }
  func.func @transform_0(%arg0: i32) -> (i32, i32, i32) {
    %c0_i32 = arith.constant 0 : i32
    %c0_i32_0 = arith.constant 0 : i32
    %c0_i32_1 = arith.constant 0 : i32
    return %arg0, %c0_i32, %c0_i32_0 : i32, i32, i32
  }
  func.func @transform_1(%arg0: i32) -> (i32, i32, i32) {
    %c0_i32 = arith.constant 0 : i32
    %c0_i32_0 = arith.constant 0 : i32
    %c0_i32_1 = arith.constant 0 : i32
    return %arg0, %c0_i32, %c0_i32_0 : i32, i32, i32
  }
  func.func @transform_2(%arg0: i32) -> (i32, i32, i32) {
    %c0_i32 = arith.constant 0 : i32
    %c0_i32_0 = arith.constant 0 : i32
    %c0_i32_1 = arith.constant 0 : i32
    return %arg0, %c0_i32, %c0_i32_0 : i32, i32, i32
  }
}

</mosaic_0001>

<llo_original>
// kernel: tpu_custom_call.1
$region0: #{tpu_custom_call.1}
  #allocation0 [shape = 'u32[]', space=smem, size = 0x4, offset = 0x4, fixed_abs, tag = 'smem constant byte address 0x4 - core index']
  #allocation1 [shape = 'u32[72,128]{1,0:T(1,128)}', space=vmem, size = 0x9000, scoped, tag = 'internal scratch']
  %s0 = inlined_call_operand.hbm [shape: f32[2,1,32], index: 0, kind: input, shape index: {}]
  %s1 = inlined_call_operand.hbm [shape: f32[2,8,32], index: 1, kind: input, shape index: {}]
  %s2 = inlined_call_operand.hbm [shape: f32[2,8,32], index: 2, kind: output, shape index: {}]
  %s3 = sld [smem:[#allocation0]]
  $region49: #{tpu_custom_call.1} parent=0
    _
  %s5 = ssub.s32 1, %s3
  %s6 = scalar_select 0, %s5, %s3
  $region1: #{tpu_custom_call.1} parent=0
    #allocation2 [shape = 'u8[1024]{0}', space=vmem, size = 0x400, scoped, tag = 'input window, operand 0']
    #allocation3 [shape = 's32[2]{0}', space=sflag, size = 0x8, scoped, tag = 'scoped memory for tpu_custom_call.1']
    #allocation4 [shape = 's32[2]{0}', space=sflag, size = 0x8, scoped, tag = 'scoped memory for tpu_custom_call.1']
    #allocation5 [shape = 'u8[8192]{0}', space=vmem, size = 0x2000, scoped, tag = 'input window, operand 1']
    #allocation6 [shape = 's32[2]{0}', space=sflag, size = 0x8, scoped, tag = 'scoped memory for tpu_custom_call.1']
    #allocation7 [shape = 'u8[8192]{0}', space=vmem, size = 0x2000, scoped, tag = 'output window, operand 0']
    %7 = vsyncpa [#allocation3], 0
    %s8 = scalar_lea.sflag [#allocation3], 1
    %9 = vsyncpa %s8, 0
    %10 = vsyncpa [#allocation6], 0
    %s11 = scalar_lea.sflag [#allocation6], 1
    %12 = vsyncpa %s11, 0
    %13 = vsyncpa [#allocation4], 0
    %s14 = scalar_lea.sflag [#allocation4], 1
    %15 = vsyncpa %s14, 0
    loop: start=0, step=1, limit=4
    $region2: #{tpu_custom_call.1} parent=1 // loop_pre_header
      _
    $region3: #{tpu_custom_call.1} parent=1 // loop_header
      %s17 = sphi 0, %s21
      %p18 = scmp.ge.s32.totalorder %s17, 4
      %s27 = sphi 0, %s29
      %s30 = sphi 0, %s27
      %s31 = sphi 0, %s30
      %s47 = sphi 0, %s31
      %s53 = sphi 0, %s55
      %s56 = sphi 0, %s53
      %s57 = sphi 0, %s56
      %s73 = sphi 0, %s57
      %s79 = sphi 0, %s81
      %s82 = sphi 0, %s79
      %s83 = sphi 0, %s82
      %s99 = sphi 0, %s83
    $region4: #{tpu_custom_call.1} parent=1 // loop_header_branch
      %20 = sbr.rel (%p18) target = $region8
    $region5: #{tpu_custom_call.1} parent=1 // loop_body
      %s22 = ssub.s32 %s17, 1
      %s23 = ssub.s32 %s17, 2
      %s24 = sadd.s32 %s17, 1
      %s25 = ssub.s32 %s17, %s24
      %p26 = scmp.eq.s32.totalorder %s25, 0
      %s28 = sadd.s32 %s27, 1
      %s29 = scalar_select %p26, %s27, %s28
      %p32 = pneg %p26
      %p33 = scmp.eq.s32.totalorder %s17, 1
      %p34 = por %p32, %p33
      %p35 = scmp.ne.s32.totalorder %s27, %s30
      %p36 = scmp.eq.s32.totalorder %s17, 0
      %p37 = por %p35, %p36
      %p38 = scmp.ne.s32.totalorder %s27, %s30
      %p39 = scmp.eq.s32.totalorder %s22, 1
      %p40 = por %p38, %p39
      %p41 = scmp.ne.s32.totalorder %s30, %s31
      %p42 = scmp.eq.s32.totalorder %s22, 0
      %p43 = por %p41, %p42
      %p44 = scmp.ne.s32.totalorder %s30, %s31
      %p45 = scmp.eq.s32.totalorder %s23, 1
      %p46 = por %p44, %p45
      %p48 = scmp.ne.s32.totalorder %s31, %s47
      %p49 = scmp.eq.s32.totalorder %s23, 0
      %p50 = por %p48, %p49
      %s51 = ssub.s32 %s17, %s24
      %p52 = scmp.eq.s32.totalorder %s51, 0
      %s54 = sadd.s32 %s53, 1
      %s55 = scalar_select %p52, %s53, %s54
      %p58 = pneg %p52
      %p59 = scmp.eq.s32.totalorder %s17, 1
      %p60 = por %p58, %p59
      %p61 = scmp.ne.s32.totalorder %s53, %s56
      %p62 = scmp.eq.s32.totalorder %s17, 0
      %p63 = por %p61, %p62
      %p64 = scmp.ne.s32.totalorder %s53, %s56
      %p65 = scmp.eq.s32.totalorder %s22, 1
      %p66 = por %p64, %p65
      %p67 = scmp.ne.s32.totalorder %s56, %s57
      %p68 = scmp.eq.s32.totalorder %s22, 0
      %p69 = por %p67, %p68
      %p70 = scmp.ne.s32.totalorder %s56, %s57
      %p71 = scmp.eq.s32.totalorder %s23, 1
      %p72 = por %p70, %p71
      %p74 = scmp.ne.s32.totalorder %s57, %s73
      %p75 = scmp.eq.s32.totalorder %s23, 0
      %p76 = por %p74, %p75
      %s77 = ssub.s32 %s17, %s24
      %p78 = scmp.eq.s32.totalorder %s77, 0
      %s80 = sadd.s32 %s79, 1
      %s81 = scalar_select %p78, %s79, %s80
      %p84 = pneg %p78
      %p85 = scmp.eq.s32.totalorder %s17, 1
      %p86 = por %p84, %p85
      %p87 = scmp.ne.s32.totalorder %s79, %s82
      %p88 = scmp.eq.s32.totalorder %s17, 0
      %p89 = por %p87, %p88
      %p90 = scmp.ne.s32.totalorder %s79, %s82
      %p91 = scmp.eq.s32.totalorder %s22, 1
      %p92 = por %p90, %p91
      %p93 = scmp.ne.s32.totalorder %s82, %s83
      %p94 = scmp.eq.s32.totalorder %s22, 0
      %p95 = por %p93, %p94
      %p96 = scmp.ne.s32.totalorder %s82, %s83
      %p97 = scmp.eq.s32.totalorder %s23, 1
      %p98 = por %p96, %p97
      %p100 = scmp.ne.s32.totalorder %s83, %s99
      %p101 = scmp.eq.s32.totalorder %s23, 0
      %p102 = por %p100, %p101
      %p103 = scmp.le.s32.totalorder 1, %s17
      %p104 = scmp.lt.s32.totalorder %s17, 3
      %p105 = pnand %p103, %p104
      %p106 = pneg %p105
      // Predicated region
      $region9: #{tpu_custom_call.1} parent=5 // pred_check
        _
      $region10: #{tpu_custom_call.1} parent=5 // pred_check_branch
        %108 = sbr.rel (%p105) target = $region12
      $region11: #{tpu_custom_call.1} parent=5 // pred_region
        %s109 = ssub.s32 %s17, 1
      $region12: #{tpu_custom_call.1} parent=5 // pred_fallthru
        _
      %p110 = scmp.lt.s32.totalorder %s17, 2
      // Predicated region
      $region13: #{tpu_custom_call.1} parent=5 // pred_check
        %p111 = pneg %p110
      $region14: #{tpu_custom_call.1} parent=5 // pred_check_branch
        %113 = sbr.rel (%p111) target = $region16
      $region15: #{tpu_custom_call.1} parent=5 // pred_region
        // Predicated region
        $region17: #{tpu_custom_call.1} parent=15 // pred_check
          %p114 = pneg %p37
        $region18: #{tpu_custom_call.1} parent=15 // pred_check_branch
          %116 = sbr.rel (%p114) target = $region20
        $region19: #{tpu_custom_call.1} parent=15 // pred_region
          %s117 = sand.u32 %s27, 1
          %s118 = scalar_lea.sflag [#allocation3], %s117
          %s119 = sand.u32 %s27, 1
          %s120 = scalar_lea.vmem [#allocation2], %s119
          %122 = vsyncadd %s118, 0
          %s123 = scalar_lea.hbm %s0, %s17
          %s125 = sshll.u32 %s123, 4
          %s126 = int_to_ptr.hbm [resolvable:$true] %s125
          %s127 = sshll.u32 %s120, 4
          %s128 = int_to_ptr.vmem [resolvable:$true] %s127
          %130 = dma.hbm_to_vmem [thread:$0]  %s126, 16, %s128, %s118
        $region20: #{tpu_custom_call.1} parent=15 // pred_fallthru
          _
        // Predicated region
        $region21: #{tpu_custom_call.1} parent=15 // pred_check
          %p131 = pneg %p63
        $region22: #{tpu_custom_call.1} parent=15 // pred_check_branch
          %133 = sbr.rel (%p131) target = $region24
        $region23: #{tpu_custom_call.1} parent=15 // pred_region
          %s134 = sand.u32 %s53, 1
          %s135 = scalar_lea.sflag [#allocation6], %s134
          %s136 = sand.u32 %s53, 1
          %s137 = smul.addr %s136, 8
          %s138 = scalar_lea.vmem [#allocation5], %s137
          %140 = vsyncadd %s135, 0
          %s141 = smul.addr %s17, 8
          %s142 = scalar_lea.hbm %s1, %s141
          %s144 = sshll.u32 %s142, 4
          %s145 = int_to_ptr.hbm [resolvable:$true] %s144
          %s146 = sshll.u32 %s138, 4
          %s147 = int_to_ptr.vmem [resolvable:$true] %s146
          %149 = dma.hbm_to_vmem [thread:$0]  %s145, 128, %s147, %s135
        $region24: #{tpu_custom_call.1} parent=15 // pred_fallthru
          _
      $region16: #{tpu_custom_call.1} parent=5 // pred_fallthru
        _
      %p150 = scmp.le.s32.totalorder 1, %s17
      %p151 = scmp.lt.s32.totalorder %s17, 3
      %p152 = pnand %p150, %p151
      %p153 = pneg %p152
      // Predicated region
      $region25: #{tpu_custom_call.1} parent=5 // pred_check
        _
      $region26: #{tpu_custom_call.1} parent=5 // pred_check_branch
        %155 = sbr.rel (%p152) target = $region28
      $region27: #{tpu_custom_call.1} parent=5 // pred_region
        %s156 = ssub.s32 %s17, 1
        %s157 = sand.u32 %s30, 1
        %s158 = scalar_lea.sflag [#allocation3], %s157
        %s159 = sand.u32 %s30, 1
        %s160 = scalar_lea.vmem [#allocation2], %s159
        // Predicated region
        $region29: #{tpu_custom_call.1} parent=27 // pred_check
          %p161 = pneg %p43
        $region30: #{tpu_custom_call.1} parent=27 // pred_check_branch
          %163 = sbr.rel (%p161) target = $region32
        $region31: #{tpu_custom_call.1} parent=27 // pred_region
          %165 = dma.done %s158, 16
        $region32: #{tpu_custom_call.1} parent=27 // pred_fallthru
          _
        %s166 = sand.u32 %s56, 1
        %s167 = scalar_lea.sflag [#allocation6], %s166
        %s168 = sand.u32 %s56, 1
        %s169 = smul.addr %s168, 8
        %s170 = scalar_lea.vmem [#allocation5], %s169
        // Predicated region
        $region33: #{tpu_custom_call.1} parent=27 // pred_check
          %p171 = pneg %p69
        $region34: #{tpu_custom_call.1} parent=27 // pred_check_branch
          %173 = sbr.rel (%p171) target = $region36
        $region35: #{tpu_custom_call.1} parent=27 // pred_region
          %175 = dma.done %s167, 128
        $region36: #{tpu_custom_call.1} parent=27 // pred_fallthru
          _
        %s176 = sand.u32 %s30, 1
        %s177 = scalar_lea.sflag [#allocation3], %s176
        %s178 = sand.u32 %s30, 1
        %s179 = scalar_lea.vmem [#allocation2], %s178
        %p180 = pneg %p43
        %p181 = pneg %p40
        %s182 = sand.u32 %s56, 1
        %s183 = scalar_lea.sflag [#allocation6], %s182
        %s184 = sand.u32 %s56, 1
        %s185 = smul.addr %s184, 8
        %s186 = scalar_lea.vmem [#allocation5], %s185
        %p187 = pneg %p69
        %p188 = pneg %p66
        %p189 = pneg %p95
        %p190 = pneg %p92
        %s191 = sand.u32 %s82, 1
        %s192 = scalar_lea.sflag [#allocation4], %s191
        %s193 = sand.u32 %s82, 1
        %s194 = smul.addr %s193, 8
        %s195 = scalar_lea.vmem [#allocation7], %s194
        %v196 = vld [vmem:[%s170] sm:$0xff]
        %v197 = vld [vmem:[%s160] sm:$0x1]
        %v199 = vperm.slane %v197, 0
        %v201 = vmul.f32 %v196, %v199
        %vm202 = vcmask 261120
        %203 = vst.msk [vmem:[%s195] sm:$0xff] %vm202, %v201
        %s204 = sand.u32 %s82, 1
        %s205 = scalar_lea.sflag [#allocation4], %s204
        %s206 = sand.u32 %s82, 1
        %s207 = smul.addr %s206, 8
        %s208 = scalar_lea.vmem [#allocation7], %s207
        // Predicated region
        $region37: #{tpu_custom_call.1} parent=27 // pred_check
          %p209 = pneg %p92
        $region38: #{tpu_custom_call.1} parent=27 // pred_check_branch
          %211 = sbr.rel (%p209) target = $region40
        $region39: #{tpu_custom_call.1} parent=27 // pred_region
          %213 = vsyncadd %s205, 0
          %s214 = smul.addr %s22, 8
          %s215 = scalar_lea.hbm %s2, %s214
          %s217 = sshll.u32 %s208, 4
          %s218 = int_to_ptr.vmem [resolvable:$true] %s217
          %s219 = sshll.u32 %s215, 4
          %s220 = int_to_ptr.hbm [resolvable:$true] %s219
          %222 = dma.vmem_to_hbm [thread:$0]  %s218, 128, %s220, %s205
        $region40: #{tpu_custom_call.1} parent=27 // pred_fallthru
          _
      $region28: #{tpu_custom_call.1} parent=5 // pred_fallthru
        _
      %p223 = scmp.le.s32.totalorder 2, %s17
      // Predicated region
      $region41: #{tpu_custom_call.1} parent=5 // pred_check
        %p224 = pneg %p223
      $region42: #{tpu_custom_call.1} parent=5 // pred_check_branch
        %226 = sbr.rel (%p224) target = $region44
      $region43: #{tpu_custom_call.1} parent=5 // pred_region
        %s227 = ssub.s32 %s17, 2
        // Predicated region
        $region45: #{tpu_custom_call.1} parent=43 // pred_check
          %p228 = pneg %p98
        $region46: #{tpu_custom_call.1} parent=43 // pred_check_branch
          %230 = sbr.rel (%p228) target = $region48
        $region47: #{tpu_custom_call.1} parent=43 // pred_region
          %s231 = sand.u32 %s83, 1
          %s232 = scalar_lea.sflag [#allocation4], %s231
          %s233 = sand.u32 %s83, 1
          %s234 = smul.addr %s233, 8
          %s235 = scalar_lea.vmem [#allocation7], %s234
          %237 = dma.done %s232, 128
        $region48: #{tpu_custom_call.1} parent=43 // pred_fallthru
          _
      $region44: #{tpu_custom_call.1} parent=5 // pred_fallthru
        _
    $region6: #{tpu_custom_call.1} parent=1 // loop_footer
      %s21 = sadd.s32 1, %s17
    $region7: #{tpu_custom_call.1} parent=1 // loop_footer_branch
      %16 = sbr.rel target = $region3
    $region8: #{tpu_custom_call.1} parent=1 // loop_exit
      _
    %238 = vsyncpa [#allocation3], 1
    %s239 = scalar_lea.sflag [#allocation3], 1
    %240 = vsyncpa %s239, 1
    %241 = vsyncpa [#allocation6], 1
    %s242 = scalar_lea.sflag [#allocation6], 1
    %243 = vsyncpa %s242, 1
    %244 = vsyncpa [#allocation4], 1
    %s245 = scalar_lea.sflag [#allocation4], 1
    %246 = vsyncpa %s245, 1

</llo_original>
